<compile_context>
chip_gen: v6e
topology: v6e:2x2x1
jax: 0.10.0
libtpu: 0.0.40
codegen_flags: <defaults>
</compile_context>

<pallas_src>
import functools

import jax
import jax.numpy as jnp
from jax.experimental import pallas as pl
from jax.experimental.pallas import tpu as pltpu


def _vq_kernel(x_ref, embed_t_ref, embed_ref, half_e2_ref, q_ref, idx_ref):
    x = x_ref[...]                 # (TM, D) f32
    e_t = embed_t_ref[...]         # (D, K)  f32  (pre-transposed in wrapper)
    half_e2 = half_e2_ref[...]     # (1, K)  f32  (0.5 * ||E||^2, precomputed)

    # argmax of -(||x||^2 - 2 x E^T + ||E||^2) == argmax of (x E^T - 0.5||E||^2)
    xe = jnp.dot(x, e_t, preferred_element_type=jnp.float32)    # (TM, K)  MXU
    score = xe - half_e2                                        # (TM, K)  VPU

    idx = jnp.argmax(score, axis=-1).astype(jnp.int32)          # (TM,)    XLU
    idx_ref[...] = idx[None, None, :]                           # lane-dense store

    # quantize = F.embedding(embed_ind, embed) realized as one-hot @ embed (MXU)
    tm, k = score.shape
    onehot = (jax.lax.broadcasted_iota(jnp.int32, (tm, k), 1) == idx[:, None]
              ).astype(jnp.float32)                             # (TM, K)
    q_ref[...] = jnp.dot(onehot, embed_ref[...],
                         preferred_element_type=jnp.float32)    # (TM, D)


def _round_up(a, b):
    return ((a + b - 1) // b) * b


@functools.partial(jax.jit, static_argnames=("tm",))
def euclidean_codebook_forward(x, embed, tm=256):
    """Returns (quantize, embed_ind) matching EuclideanCodebook.forward (eval)."""
    shape = x.shape
    d = shape[-1]
    k = embed.shape[0]

    flat = x.reshape(-1, d)
    if flat.dtype != jnp.float32:          # module does x.float()
        flat = flat.astype(jnp.float32)
    m = flat.shape[0]

    # Clamp tile size for tiny inputs (sublane-aligned), keep it large otherwise.
    tm = max(8, min(tm, _round_up(m, 8)))

    grid_m = pl.cdiv(m, tm)
    m_pad = grid_m * tm
    if m_pad != m:                         # pad rows; padded rows sliced away below
        flat = jnp.pad(flat, ((0, m_pad - m), (0, 0)))

    embed_f32 = embed.astype(jnp.float32)               # (K, D)
    embed_t = embed_f32.T                                # (D, K)  once, by XLA
    half_e2 = (0.5 * jnp.sum(embed_f32 * embed_f32, axis=-1))[None, :]  # (1, K)

    q, idx3d = pl.pallas_call(
        _vq_kernel,
        out_shape=(
            jax.ShapeDtypeStruct((m_pad, d), jnp.float32),      # quantize (flat)
            jax.ShapeDtypeStruct((grid_m, 1, tm), jnp.int32),   # embed_ind, lane-dense
        ),
        grid_spec=pltpu.PrefetchScalarGridSpec(
            num_scalar_prefetch=0,
            grid=(grid_m,),
            in_specs=[
                pl.BlockSpec((tm, d), lambda i: (i, 0)),        # x row tile
                pl.BlockSpec((d, k), lambda i: (0, 0)),         # codebook^T (resident)
                pl.BlockSpec((k, d), lambda i: (0, 0)),         # codebook   (resident)
                pl.BlockSpec((1, k), lambda i: (0, 0)),         # 0.5*||E||^2
            ],
            out_specs=[
                pl.BlockSpec((tm, d), lambda i: (i, 0)),
                pl.BlockSpec((1, 1, tm), lambda i: (i, 0, 0)),
            ],
        ),
        compiler_params=pltpu.CompilerParams(
            dimension_semantics=("parallel",),
            vmem_limit_bytes=64 * 1024 * 1024,
        ),
    )(flat, embed_t, embed_f32, half_e2)

    quantize = q[:m].reshape(shape)
    embed_ind = idx3d.reshape(-1)[:m].reshape(shape[:-1])
    return quantize, embed_ind


def _reference(x, embed):
    flat = x.reshape(-1, x.shape[-1]).astype(jnp.float32)
    e = embed.astype(jnp.float32)
    dist = -(jnp.sum(flat**2, 1, keepdims=True)
             - 2.0 * flat @ e.T
             + jnp.sum(e**2, 1)[None, :])
    idx = jnp.argmax(dist, axis=-1)
    quant = e[idx]
    return quant.reshape(x.shape), idx.reshape(x.shape[:-1]).astype(jnp.int32)


if __name__ == "__main__":
    dim = 32
    codebook_size = 128
    batch, seq = 2, 8

    key = jax.random.PRNGKey(0)
    kx, ke = jax.random.split(key)
    x = jax.random.normal(kx, (batch, seq, dim), dtype=jnp.float32)
    # embed = torch.randn(codebook_size, dim) -> deterministic normal init
    embed = jax.random.normal(ke, (codebook_size, dim), dtype=jnp.float32)

    quantize, embed_ind = euclidean_codebook_forward(x, embed)
    quantize = jax.block_until_ready(quantize)
    embed_ind = jax.block_until_ready(embed_ind)

    q_ref, i_ref = _reference(x, embed)
    assert quantize.shape == x.shape
    assert embed_ind.shape == x.shape[:-1]
    assert jnp.array_equal(embed_ind.astype(jnp.int32), i_ref)
    assert jnp.allclose(quantize, q_ref, atol=1e-5, rtol=1e-5)

    print("KERNEL_OK")
</pallas_src>

<mosaic_0001>
module attributes {stable_mosaic.version = 11 : i64} {
  func.func @_vq_kernel(%arg0: i32, %arg1: memref<16x32xf32, #tpu.memory_space<vmem>>, %arg2: memref<32x128xf32, #tpu.memory_space<vmem>>, %arg3: memref<128x32xf32, #tpu.memory_space<vmem>>, %arg4: memref<1x128xf32, #tpu.memory_space<vmem>>, %arg5: memref<16x32xf32, #tpu.memory_space<vmem>>, %arg6: memref<1x1x16xi32, #tpu.memory_space<vmem>>) attributes {dimension_semantics = [#tpu.dimension_semantics<parallel>], iteration_bounds = array<i64: 1>, scalar_prefetch = 0 : i64, scratch_operands = 0 : i64, tpu.core_type = #tpu.core_type<tc>, window_params = [{transform_indices = @transform_0, window_bounds = array<i64: 16, 32>}, {pipeline_mode = #tpu.pipeline_mode<synchronous>, transform_indices = @transform_1, window_bounds = array<i64: 32, 128>}, {pipeline_mode = #tpu.pipeline_mode<synchronous>, transform_indices = @transform_2, window_bounds = array<i64: 128, 32>}, {pipeline_mode = #tpu.pipeline_mode<synchronous>, transform_indices = @transform_3, window_bounds = array<i64: 1, 128>}, {transform_indices = @transform_4, window_bounds = array<i64: 16, 32>}, {transform_indices = @transform_5, window_bounds = array<i64: 1, 1, 16>}]} {
    %c0 = arith.constant 0 : index
    %c0_0 = arith.constant 0 : index
    %0 = vector.load %arg1[%c0, %c0_0] : memref<16x32xf32, #tpu.memory_space<vmem>>, vector<16x32xf32>
    %c0_1 = arith.constant 0 : index
    %c0_2 = arith.constant 0 : index
    %1 = vector.load %arg2[%c0_1, %c0_2] : memref<32x128xf32, #tpu.memory_space<vmem>>, vector<32x128xf32>
    %c0_3 = arith.constant 0 : index
    %c0_4 = arith.constant 0 : index
    %2 = vector.load %arg4[%c0_3, %c0_4] : memref<1x128xf32, #tpu.memory_space<vmem>>, vector<1x128xf32>
    %cst = arith.constant dense<0.000000e+00> : vector<16x128xf32>
    %3 = tpu.matmul %0, %1, %cst {dimension_numbers = #tpu.dot_dimension_numbers<[1], [0], [0], [1], [0, 0, 1, 1], [], []>} : vector<16x32xf32>, vector<32x128xf32>, vector<16x128xf32> -> vector<16x128xf32>
    %4 = vector.broadcast %2 : vector<1x128xf32> to vector<16x128xf32>
    %5 = arith.subf %3, %4 : vector<16x128xf32>
    %6 = tpu.reduce_index %5 {axis = 1 : i32, kind = #tpu.reduction_kind<arg_max>} : vector<16x128xf32> -> vector<16xi32>
    %7 = vector.shape_cast %6 : vector<16xi32> to vector<1x1x16xi32>
    %c0_5 = arith.constant 0 : index
    %c0_6 = arith.constant 0 : index
    %c0_7 = arith.constant 0 : index
    %8 = vector.load %arg6[%c0_5, %c0_6, %c0_7] : memref<1x1x16xi32, #tpu.memory_space<vmem>>, vector<1x1x16xi32>
    tpu.vector_store %arg6[%c0_5, %c0_6, %c0_7], %7 {strides = array<i32>} : memref<1x1x16xi32, #tpu.memory_space<vmem>>, vector<1x1x16xi32>,
    %9 = tpu.iota {dimensions = array<i32: 1>} : vector<16x128xi32>
    %10 = vector.shape_cast %6 : vector<16xi32> to vector<16x1xi32>
    %11 = vector.broadcast %10 : vector<16x1xi32> to vector<16x128xi32>
    %12 = arith.cmpi eq, %9, %11 : vector<16x128xi32>
    %13 = arith.extui %12 : vector<16x128xi1> to vector<16x128xi32>
    %14 = arith.sitofp %13 : vector<16x128xi32> to vector<16x128xf32>
    %c0_8 = arith.constant 0 : index
    %c0_9 = arith.constant 0 : index
    %15 = vector.load %arg3[%c0_8, %c0_9] : memref<128x32xf32, #tpu.memory_space<vmem>>, vector<128x32xf32>
    %cst_10 = arith.constant dense<0.000000e+00> : vector<16x32xf32>
    %16 = tpu.matmul %14, %15, %cst_10 {dimension_numbers = #tpu.dot_dimension_numbers<[1], [0], [0], [1], [0, 0, 1, 1], [], []>} : vector<16x128xf32>, vector<128x32xf32>, vector<16x32xf32> -> vector<16x32xf32>
    %c0_11 = arith.constant 0 : index
    %c0_12 = arith.constant 0 : index
    %17 = vector.load %arg5[%c0_11, %c0_12] : memref<16x32xf32, #tpu.memory_space<vmem>>, vector<16x32xf32>
    tpu.vector_store %arg5[%c0_11, %c0_12], %16 {strides = array<i32>} : memref<16x32xf32, #tpu.memory_space<vmem>>, vector<16x32xf32>,
    return
  }
  func.func @transform_0(%arg0: i32) -> (i32, i32) {
    %c0_i32 = arith.constant 0 : i32
    %c0_i32_0 = arith.constant 0 : i32
    return %arg0, %c0_i32 : i32, i32
  }
  func.func @transform_1(%arg0: i32) -> (i32, i32) {
    %c0_i32 = arith.constant 0 : i32
    %c0_i32_0 = arith.constant 0 : i32
    %c0_i32_1 = arith.constant 0 : i32
    return %c0_i32, %c0_i32_0 : i32, i32
  }
  func.func @transform_2(%arg0: i32) -> (i32, i32) {
    %c0_i32 = arith.constant 0 : i32
    %c0_i32_0 = arith.constant 0 : i32
    %c0_i32_1 = arith.constant 0 : i32
    return %c0_i32, %c0_i32_0 : i32, i32
  }
  func.func @transform_3(%arg0: i32) -> (i32, i32) {
    %c0_i32 = arith.constant 0 : i32
    %c0_i32_0 = arith.constant 0 : i32
    %c0_i32_1 = arith.constant 0 : i32
    return %c0_i32, %c0_i32_0 : i32, i32
  }
  func.func @transform_4(%arg0: i32) -> (i32, i32) {
    %c0_i32 = arith.constant 0 : i32
    %c0_i32_0 = arith.constant 0 : i32
    return %arg0, %c0_i32 : i32, i32
  }
  func.func @transform_5(%arg0: i32) -> (i32, i32, i32) {
    %c0_i32 = arith.constant 0 : i32
    %c0_i32_0 = arith.constant 0 : i32
    %c0_i32_1 = arith.constant 0 : i32
    return %arg0, %c0_i32, %c0_i32_0 : i32, i32, i32
  }
}

</mosaic_0001>

<llo_original>
// kernel: euclidean_codebook_forward.1
$region0: #{euclidean_codebook_forward.1}
  #allocation0 [shape = 'u32[]', space=smem, size = 0x4, offset = 0x4, fixed_abs, tag = 'smem constant byte address 0x4 - core index']
  #allocation1 [shape = 'u32[144,128]{1,0:T(1,128)}', space=vmem, size = 0x12000, scoped, tag = 'internal scratch']
  %s0 = inlined_call_operand.vmem [shape: f32[16,32], index: 0, kind: input, shape index: {}]
  %s1 = inlined_call_operand.vmem [shape: f32[32,128], index: 1, kind: input, shape index: {}]
  %s2 = inlined_call_operand.vmem [shape: f32[128,32], index: 2, kind: input, shape index: {}]
  %s3 = inlined_call_operand.vmem [shape: f32[1,128], index: 3, kind: input, shape index: {}]
  %s4 = inlined_call_operand.hbm [shape: f32[16,32], index: 4, kind: output, shape index: {0}]
  %s5 = inlined_call_operand.vmem [shape: s32[1,1,16], index: 5, kind: output, shape index: {1}]
  %6 = xla_tuple %s4, %s5
  %s7 = sld [smem:[#allocation0]]
  $region34: #{euclidean_codebook_forward.1} parent=0
    _
  %s9 = ssub.s32 1, %s7
  %s10 = scalar_select 0, %s9, %s7
  $region1: #{euclidean_codebook_forward.1} parent=0
    #allocation2 [shape = 'u8[8192]{0}', space=vmem, size = 0x2000, scoped, tag = 'output window, operand 0, single buffered']
    #allocation3 [shape = 's32[1]{0}', space=sflag, size = 0x4, scoped, tag = 'scoped memory for euclidean_codebook_forward.1']
    %11 = vsyncpa [#allocation3], 0
    // Predicated region
    $region2: #{euclidean_codebook_forward.1} parent=1 // pred_check
      _
    $region3: #{euclidean_codebook_forward.1} parent=1 // pred_check_branch
      %13 = sbr.rel (0) target = $region5
    $region4: #{euclidean_codebook_forward.1} parent=1 // pred_region
      _
    $region5: #{euclidean_codebook_forward.1} parent=1 // pred_fallthru
      _
    // Predicated region
    $region6: #{euclidean_codebook_forward.1} parent=1 // pred_check
      _
    $region7: #{euclidean_codebook_forward.1} parent=1 // pred_check_branch
      %15 = sbr.rel (0) target = $region9
    $region8: #{euclidean_codebook_forward.1} parent=1 // pred_region
      _
    $region9: #{euclidean_codebook_forward.1} parent=1 // pred_fallthru
      _
    // Predicated region
    $region10: #{euclidean_codebook_forward.1} parent=1 // pred_check
      _
    $region11: #{euclidean_codebook_forward.1} parent=1 // pred_check_branch
      %17 = sbr.rel (0) target = $region13
    $region12: #{euclidean_codebook_forward.1} parent=1 // pred_region
      _
    $region13: #{euclidean_codebook_forward.1} parent=1 // pred_fallthru
      _
    // Predicated region
    $region14: #{euclidean_codebook_forward.1} parent=1 // pred_check
      _
    $region15: #{euclidean_codebook_forward.1} parent=1 // pred_check_branch
      %19 = sbr.rel (0) target = $region17
    $region16: #{euclidean_codebook_forward.1} parent=1 // pred_region
      _
    $region17: #{euclidean_codebook_forward.1} parent=1 // pred_fallthru
      _
    %v20 = vld [vmem:[%s0] sm:$0xff]
    %v21 = vld [vmem:[%s0 + $0x8] sm:$0xff]
    %v22 = vld [vmem:[%s1] sm:$0xff]
    %v23 = vld [vmem:[%s1 + $0x8] sm:$0xff]
    %v24 = vld [vmem:[%s1 + $0x10] sm:$0xff]
    %v25 = vld [vmem:[%s1 + $0x18] sm:$0xff]
    %v26 = vld [vmem:[%s3] sm:$0x1]
    %vm27 = vcmask 261120
    %v29 = vsel %vm27, %v20, 0
    %v32 = vsel %vm27, %v21, 0
    %34 = vmatprep.subr.mxu0 0.0
    %35 = vmatpush1.msra.mxu0 0.0
    %36 = vmatprep.subr.mxu0 0.0
    %37 = vmatpush1.msra.mxu0 0.0
    %38 = vmatprep.subr.mxu0 0.0
    %39 = vmatpush1.msra.mxu0 0.0
    %40 = vmatprep.subr.mxu0 0.0
    %41 = vmatpush1.msra.mxu0 0.0
    %42 = vmatprep.subr.mxu0 0.0
    %43 = vmatpush1.msra.mxu0 0.0
    %44 = vmatprep.subr.mxu0 0.0
    %45 = vmatpush1.msra.mxu0 0.0
    %46 = vmatprep.subr.mxu0 0.0
    %47 = vmatpush1.msra.mxu0 0.0
    %48 = vmatprep.subr.mxu0 0.0
    %49 = vmatpush1.msra.mxu0 0.0
    %50 = vmatprep.subr.mxu0 0.0
    %51 = vmatpush1.msra.mxu0 0.0
    %52 = vmatprep.subr.mxu0 0.0
    %53 = vmatpush1.msra.mxu0 0.0
    %54 = vmatprep.subr.mxu0 0.0
    %55 = vmatpush1.msra.mxu0 0.0
    %56 = vmatprep.subr.mxu0 0.0
    %57 = vmatpush1.msra.mxu0 0.0
    %58 = vmatprep.subr.mxu0 0.0
    %59 = vmatpush1.msra.mxu0 %v25
    %60 = vmatprep.subr.mxu0 0.0
    %61 = vmatpush1.msra.mxu0 %v24
    %62 = vmatprep.subr.mxu0 0.0
    %63 = vmatpush1.msra.mxu0 %v23
    %64 = vmatprep.subr.mxu0 0.0
    %65 = vmatpush1.msra.mxu0 %v22
    %66 = vmatprep.subr.mxu0 0.0
    %67 = vmatpush2.msra.mxu0 0.0
    %68 = vmatprep.subr.mxu0 0.0
    %69 = vmatpush2.msra.mxu0 0.0
    %70 = vmatprep.subr.mxu0 0.0
    %71 = vmatpush2.msra.mxu0 0.0
    %72 = vmatprep.subr.mxu0 0.0
    %73 = vmatpush2.msra.mxu0 0.0
    %74 = vmatprep.subr.mxu0 0.0
    %75 = vmatpush2.msra.mxu0 0.0
    %76 = vmatprep.subr.mxu0 0.0
    %77 = vmatpush2.msra.mxu0 0.0
    %78 = vmatprep.subr.mxu0 0.0
    %79 = vmatpush2.msra.mxu0 0.0
    %80 = vmatprep.subr.mxu0 0.0
    %81 = vmatpush2.msra.mxu0 0.0
    %82 = vmatprep.subr.mxu0 0.0
    %83 = vmatpush2.msra.mxu0 0.0
    %84 = vmatprep.subr.mxu0 0.0
    %85 = vmatpush2.msra.mxu0 0.0
    %86 = vmatprep.subr.mxu0 0.0
    %87 = vmatpush2.msra.mxu0 0.0
    %88 = vmatprep.subr.mxu0 0.0
    %89 = vmatpush2.msra.mxu0 0.0
    %90 = vmatprep.subr.mxu0 0.0
    %91 = vmatpush2.msra.mxu0 0.0
    %92 = vmatprep.subr.mxu0 0.0
    %93 = vmatpush2.msra.mxu0 0.0
    %94 = vmatprep.subr.mxu0 0.0
    %95 = vmatpush2.msra.mxu0 0.0
    %96 = vmatprep.subr.mxu0 0.0
    %97 = vmatpush2.msra.mxu0 0.0
    %98 = vmatprep.mubr.f32.mxu0 0.0
    %99 = vmatmul.mubr.f32.gmra.mxu0 %v29
    %v100 = vpop.f32.mrf.mxu0
    %v101 = vadd.f32 0.0, %v100
    %v102 = vpop.f32.mrf.mxu0
    %103 = vmatprep.mubr.f32.mxu0 0.0
    %104 = vmatmul.mubr.f32.gmra.mxu0 %v32
    %v105 = vpop.f32.mrf.mxu0
    %v106 = vadd.f32 0.0, %v105
    %v107 = vpop.f32.mrf.mxu0
    %108 = vdwg.mxu0
    %v110 = vlaneseq
    %v111 = vshrl.u32 %v110, 7
    %v112 = vsub.s32 0, %v111
    %v113 = vrot.slane %v26, %v112
    %v115 = vsub.f32 %v101, %v113
    %v116 = vsub.f32 %v106, %v113
    %117 = vmax.index.xlane.f32.xlu0 %v115
    %v118 = vpop.xlane.xlu0 %117
    %119 = vmax.index.xlane.f32.xlu0 %v116
    %v120 = vpop.xlane.xlu0 %119
    %v121 = vlaneseq
    %v122 = vand.u32 %v121, 127
    %v123 = vlaneseq
    %v124 = vshrl.u32 %v123, 7
    %v125 = vsub.s32 %v122, %v124
    %v126 = vrot.slane %v118, %v125
    %v127 = vadd.s32 %v122, 4294967288
    %v128 = vlaneseq
    %v129 = vshrl.u32 %v128, 7
    %v130 = vsub.s32 %v127, %v129
    %v131 = vrot.slane %v120, %v130
    %vm132 = vcmask 130112
    %v133 = vsel %vm132, %v131, %v126
    %vm134 = vcmask 122880
    %135 = vst.msk [vmem:[%s5] sm:$0x1] %vm134, %v133
    %vm136 = vcmp.eq.s32.totalorder %v122, %v118
    %vm137 = vcmp.eq.s32.totalorder %v122, %v120
    %v138 = vsel %vm136, 1, 0
    %v139 = vsel %vm137, 1, 0
    %v140 = vcvt.s32.f32 %v138
    %v141 = vcvt.s32.f32 %v139
    %v142 = vld [vmem:[%s2] sm:$0xff]
    %v143 = vld [vmem:[%s2 + $0x8] sm:$0xff]
    %v144 = vld [vmem:[%s2 + $0x10] sm:$0xff]
    %v145 = vld [vmem:[%s2 + $0x18] sm:$0xff]
    %v146 = vld [vmem:[%s2 + $0x20] sm:$0xff]
    %v147 = vld [vmem:[%s2 + $0x28] sm:$0xff]
    %v148 = vld [vmem:[%s2 + $0x30] sm:$0xff]
    %v149 = vld [vmem:[%s2 + $0x38] sm:$0xff]
    %v150 = vld [vmem:[%s2 + $0x40] sm:$0xff]
    %v151 = vld [vmem:[%s2 + $0x48] sm:$0xff]
    %v152 = vld [vmem:[%s2 + $0x50] sm:$0xff]
    %v153 = vld [vmem:[%s2 + $0x58] sm:$0xff]
    %v154 = vld [vmem:[%s2 + $0x60] sm:$0xff]
    %v155 = vld [vmem:[%s2 + $0x68] sm:$0xff]
    %v156 = vld [vmem:[%s2 + $0x70] sm:$0xff]
    %v157 = vld [vmem:[%s2 + $0x78] sm:$0xff]
    %158 = vmatprep.subr.mxu0 0.0
    %159 = vmatpush1.msra.mxu0 %v157
    %160 = vmatprep.subr.mxu0 0.0
    %161 = vmatpush1.msra.mxu0 %v156
    %162 = vmatprep.subr.mxu0 0.0
    %163 = vmatpush1.msra.mxu0 %v155
    %164 = vmatprep.subr.mxu0 0.0
    %165 = vmatpush1.msra.mxu0 %v154
    %166 = vmatprep.subr.mxu0 0.0
    %167 = vmatpush1.msra.mxu0 %v153
    %168 = vmatprep.subr.mxu0 0.0
    %169 = vmatpush1.msra.mxu0 %v152
    %170 = vmatprep.subr.mxu0 0.0
    %171 = vmatpush1.msra.mxu0 %v151
    %172 = vmatprep.subr.mxu0 0.0
    %173 = vmatpush1.msra.mxu0 %v150
    %174 = vmatprep.subr.mxu0 0.0
    %175 = vmatpush1.msra.mxu0 %v149
    %176 = vmatprep.subr.mxu0 0.0
    %177 = vmatpush1.msra.mxu0 %v148
    %178 = vmatprep.subr.mxu0 0.0
    %179 = vmatpush1.msra.mxu0 %v147
    %180 = vmatprep.subr.mxu0 0.0
    %181 = vmatpush1.msra.mxu0 %v146
    %182 = vmatprep.subr.mxu0 0.0
    %183 = vmatpush1.msra.mxu0 %v145
    %184 = vmatprep.subr.mxu0 0.0
    %185 = vmatpush1.msra.mxu0 %v144
    %186 = vmatprep.subr.mxu0 0.0
    %187 = vmatpush1.msra.mxu0 %v143
    %188 = vmatprep.subr.mxu0 0.0
    %189 = vmatpush1.msra.mxu0 %v142
    %190 = vmatprep.subr.mxu0 0.0
    %191 = vmatpush2.msra.mxu0 0.0
    %192 = vmatprep.subr.mxu0 0.0
    %193 = vmatpush2.msra.mxu0 0.0
    %194 = vmatprep.subr.mxu0 0.0
    %195 = vmatpush2.msra.mxu0 0.0
    %196 = vmatprep.subr.mxu0 0.0
    %197 = vmatpush2.msra.mxu0 0.0
    %198 = vmatprep.subr.mxu0 0.0
    %199 = vmatpush2.msra.mxu0 0.0
    %200 = vmatprep.subr.mxu0 0.0
    %201 = vmatpush2.msra.mxu0 0.0
    %202 = vmatprep.subr.mxu0 0.0
    %203 = vmatpush2.msra.mxu0 0.0
    %204 = vmatprep.subr.mxu0 0.0
    %205 = vmatpush2.msra.mxu0 0.0
    %206 = vmatprep.subr.mxu0 0.0
    %207 = vmatpush2.msra.mxu0 0.0
    %208 = vmatprep.subr.mxu0 0.0
    %209 = vmatpush2.msra.mxu0 0.0
    %210 = vmatprep.subr.mxu0 0.0
    %211 = vmatpush2.msra.mxu0 0.0
    %212 = vmatprep.subr.mxu0 0.0
    %213 = vmatpush2.msra.mxu0 0.0
    %214 = vmatprep.subr.mxu0 0.0
    %215 = vmatpush2.msra.mxu0 0.0
    %216 = vmatprep.subr.mxu0 0.0
    %217 = vmatpush2.msra.mxu0 0.0
    %218 = vmatprep.subr.mxu0 0.0
    %219 = vmatpush2.msra.mxu0 0.0
    %220 = vmatprep.subr.mxu0 0.0
    %221 = vmatpush2.msra.mxu0 0.0
    %222 = vmatprep.mubr.f32.mxu0 0.0
    %223 = vmatmul.mubr.f32.gmra.mxu0 %v140
    %v224 = vpop.f32.mrf.mxu0
    %v225 = vadd.f32 0.0, %v224
    %v226 = vpop.f32.mrf.mxu0
    %227 = vmatprep.mubr.f32.mxu0 0.0
    %228 = vmatmul.mubr.f32.gmra.mxu0 %v141
    %v229 = vpop.f32.mrf.mxu0
    %v230 = vadd.f32 0.0, %v229
    %v231 = vpop.f32.mrf.mxu0
    %232 = vdwg.mxu0
    %233 = vst.msk [vmem:[#allocation2] sm:$0xff] %vm27, %v225
    %234 = vst.msk [vmem:[#allocation2 + $0x8] sm:$0xff] %vm27, %v230
    // Predicated region
    $region18: #{euclidean_codebook_forward.1} parent=1 // pred_check
      _
    $region19: #{euclidean_codebook_forward.1} parent=1 // pred_check_branch
      %236 = sbr.rel (0) target = $region21
    $region20: #{euclidean_codebook_forward.1} parent=1 // pred_region
      %s238 = ssub.s32 256, 256
      %239 = vsyncadd [#allocation3], %s238
      %s240 = sshll.u32 [#allocation2], 4
      %s241 = int_to_ptr.vmem [resolvable:$true] %s240
      %246 = dma.vmem_to_hbm [thread:$0]  %s241, 256, %s4, [#allocation3], 128, 128, 8
    $region21: #{euclidean_codebook_forward.1} parent=1 // pred_fallthru
      _
    // Predicated region
    $region22: #{euclidean_codebook_forward.1} parent=1 // pred_check
      _
    $region23: #{euclidean_codebook_forward.1} parent=1 // pred_check_branch
      %248 = sbr.rel (0) target = $region25
    $region24: #{euclidean_codebook_forward.1} parent=1 // pred_region
      _
    $region25: #{euclidean_codebook_forward.1} parent=1 // pred_fallthru
      _
    // Predicated region
    $region26: #{euclidean_codebook_forward.1} parent=1 // pred_check
      _
    $region27: #{euclidean_codebook_forward.1} parent=1 // pred_check_branch
      %250 = sbr.rel (0) target = $region29
    $region28: #{euclidean_codebook_forward.1} parent=1 // pred_region
      %251 = dma.done [#allocation3], 256
    $region29: #{euclidean_codebook_forward.1} parent=1 // pred_fallthru
      _
    // Predicated region
    $region30: #{euclidean_codebook_forward.1} parent=1 // pred_check
      _
    $region31: #{euclidean_codebook_forward.1} parent=1 // pred_check_branch
      %253 = sbr.rel (0) target = $region33
    $region32: #{euclidean_codebook_forward.1} parent=1 // pred_region
      _
    $region33: #{euclidean_codebook_forward.1} parent=1 // pred_fallthru
      _
    %254 = vsyncpa [#allocation3], 1

</llo_original>
